<compile_context>
chip_gen: v5e
topology: v5e:2x2
jax: 0.10.0
libtpu: 0.0.40
codegen_flags: <defaults>
</compile_context>

<pallas_src>
import jax
import jax.numpy as jnp
from jax.experimental import pallas as pl
from jax.experimental.pallas import tpu as pltpu

C = 14                               # Conv1d in/out channels
_SUBLANE_PAD_C = 16                  # C=14 pads to 16 sublanes in VMEM
_STREAM_BUDGET = 16 * 1024 * 1024    # double-buffered in+out stream footprint (bytes)
_VMEM_LIMIT = 32 * 1024 * 1024       # >= scoped default on v5e, safe on v6e/v7x
_MAX_TB = 64                         # cap on per-block batch rows (unrolled dot loop)


def conv1x1_kernel(x_ref, w_ref, b_ref, o_ref):
    # x_ref/o_ref: (TB, C, TL) | w_ref: (C, C) | b_ref: (C, 1)
    w = w_ref[...]                       # VMEM-resident across grid steps
    bias = b_ref[...]                    # (C, 1) lane-broadcasts for free
    for i in range(x_ref.shape[0]):      # TB is a small trace-time constant
        y = jnp.dot(w, x_ref[i], preferred_element_type=jnp.float32)
        o_ref[i] = (y + bias).astype(o_ref.dtype)


def _pick_tiles(N, L, itemsize):
    # L is either < 128 or a multiple of 128 (wrapper pads otherwise).
    if L < 128:
        TL = L                           # full (small) minor dim — allowed by tiling rule
    else:
        TL = 128
        for t in (8192, 4096, 2048, 1024, 512, 256, 128):
            if L % t == 0:
                TL = t
                break
    # Batch tile: 2x double-buffered (in + out), C padded to 16 sublanes.
    per_batch_stream = 4 * _SUBLANE_PAD_C * TL * itemsize
    TB = max(1, min(N, _STREAM_BUDGET // per_batch_stream, _MAX_TB))
    # Guarantee >= 2 grid steps so both v7x TensorCores stream (no-op on v5e/v6e).
    if pl.cdiv(N, TB) * pl.cdiv(L, TL) < 2:
        if N > 1:
            TB = pl.cdiv(N, 2)
        elif TL % 256 == 0:
            TL //= 2
    return TB, TL


def autoencoder_forward(x, w, b):
    """x: (N, 14, L), w: (14, 14) (PyTorch conv weight with k-dim squeezed), b: (14,)."""
    N, Cin, L = x.shape
    assert Cin == C
    b2 = b.reshape(C, 1).astype(jnp.float32)

    # Keep stores lane-dense: pad odd lengths >= 128 up to a 128 multiple.
    Lp = L
    if L >= 128 and L % 128 != 0:
        Lp = ((L + 127) // 128) * 128
        x = jnp.pad(x, ((0, 0), (0, 0), (0, Lp - L)))

    TB, TL = _pick_tiles(N, Lp, x.dtype.itemsize)
    grid = (pl.cdiv(N, TB), pl.cdiv(Lp, TL))

    out = pl.pallas_call(
        conv1x1_kernel,
        out_shape=jax.ShapeDtypeStruct((N, C, Lp), x.dtype),
        grid_spec=pltpu.PrefetchScalarGridSpec(
            num_scalar_prefetch=0,
            grid=grid,
            in_specs=[
                pl.BlockSpec((TB, C, TL), lambda i, j: (i, 0, j)),
                pl.BlockSpec((C, C), lambda i, j: (0, 0)),   # resident weight
                pl.BlockSpec((C, 1), lambda i, j: (0, 0)),   # resident bias
            ],
            out_specs=pl.BlockSpec((TB, C, TL), lambda i, j: (i, 0, j)),
        ),
        compiler_params=pltpu.CompilerParams(
            dimension_semantics=("parallel", "parallel"),
            vmem_limit_bytes=_VMEM_LIMIT,
        ),
        cost_estimate=pl.CostEstimate(
            flops=2 * C * C * N * L,
            transcendentals=0,
            bytes_accessed=2 * N * C * L * x.dtype.itemsize + (C * C + C) * 4,
        ),
    )(x, w, b2)

    return out[..., :L] if Lp != L else out


if __name__ == "__main__":
    key = jax.random.PRNGKey(0)
    kx, kw, kb = jax.random.split(key, 3)

    # Small shapes consistent with the module: (batch=2, channels=14, length=16)
    N, L = 2, 16
    x = jax.random.normal(kx, (N, C, L), dtype=jnp.float32)

    # Deterministic params (mimics PyTorch Conv1d uniform bound 1/sqrt(fan_in))
    bound = 1.0 / jnp.sqrt(jnp.float32(C * 1))
    w = jax.random.uniform(kw, (C, C), minval=-bound, maxval=bound, dtype=jnp.float32)
    b = jax.random.uniform(kb, (C,), minval=-bound, maxval=bound, dtype=jnp.float32)

    out = jax.block_until_ready(autoencoder_forward(x, w, b))
    ref = jnp.einsum("oc,ncl->nol", w, x) + b[None, :, None]
    assert out.shape == (N, C, L)
    assert jnp.allclose(out, ref, atol=1e-5, rtol=1e-5)

    # Larger, lane-dense shape (tiled multi-step path).
    N2, L2 = 8, 1024
    x2 = jax.random.normal(kx, (N2, C, L2), dtype=jnp.float32)
    out2 = jax.block_until_ready(autoencoder_forward(x2, w, b))
    ref2 = jnp.einsum("oc,ncl->nol", w, x2) + b[None, :, None]
    assert jnp.allclose(out2, ref2, atol=1e-5, rtol=1e-5)

    # Non-multiple-of-128 length (wrapper pad path).
    N3, L3 = 3, 300
    x3 = jax.random.normal(kx, (N3, C, L3), dtype=jnp.float32)
    out3 = jax.block_until_ready(autoencoder_forward(x3, w, b))
    ref3 = jnp.einsum("oc,ncl->nol", w, x3) + b[None, :, None]
    assert jnp.allclose(out3, ref3, atol=1e-5, rtol=1e-5)

    print("KERNEL_OK")
</pallas_src>

<mosaic_0001>
module attributes {stable_mosaic.version = 11 : i64} {
  func.func @conv1x1_kernel(%arg0: i32, %arg1: i32, %arg2: memref<1x14x16xf32, #tpu.memory_space<vmem>>, %arg3: memref<14x14xf32, #tpu.memory_space<vmem>>, %arg4: memref<14x1xf32, #tpu.memory_space<vmem>>, %arg5: memref<1x14x16xf32, #tpu.memory_space<vmem>>) attributes {dimension_semantics = [#tpu.dimension_semantics<parallel>, #tpu.dimension_semantics<parallel>], iteration_bounds = array<i64: 2, 1>, scalar_prefetch = 0 : i64, scratch_operands = 0 : i64, tpu.core_type = #tpu.core_type<tc>, window_params = [{transform_indices = @transform_0, window_bounds = array<i64: 1, 14, 16>}, {pipeline_mode = #tpu.pipeline_mode<synchronous>, transform_indices = @transform_1, window_bounds = array<i64: 14, 14>}, {pipeline_mode = #tpu.pipeline_mode<synchronous>, transform_indices = @transform_2, window_bounds = array<i64: 14, 1>}, {transform_indices = @transform_3, window_bounds = array<i64: 1, 14, 16>}]} {
    %c0 = arith.constant 0 : index
    %c0_0 = arith.constant 0 : index
    %0 = vector.load %arg3[%c0, %c0_0] : memref<14x14xf32, #tpu.memory_space<vmem>>, vector<14x14xf32>
    %c0_1 = arith.constant 0 : index
    %c0_2 = arith.constant 0 : index
    %1 = vector.load %arg4[%c0_1, %c0_2] : memref<14x1xf32, #tpu.memory_space<vmem>>, vector<14x1xf32>
    %c0_3 = arith.constant 0 : index
    %c0_4 = arith.constant 0 : index
    %c0_5 = arith.constant 0 : index
    %2 = vector.load %arg2[%c0_3, %c0_4, %c0_5] : memref<1x14x16xf32, #tpu.memory_space<vmem>>, vector<1x14x16xf32>
    %3 = vector.shape_cast %2 : vector<1x14x16xf32> to vector<14x16xf32>
    %cst = arith.constant dense<0.000000e+00> : vector<14x16xf32>
    %4 = tpu.matmul %0, %3, %cst {dimension_numbers = #tpu.dot_dimension_numbers<[1], [0], [0], [1], [0, 0, 1, 1], [], []>} : vector<14x14xf32>, vector<14x16xf32>, vector<14x16xf32> -> vector<14x16xf32>
    %5 = vector.broadcast %1 : vector<14x1xf32> to vector<14x16xf32>
    %6 = arith.addf %4, %5 : vector<14x16xf32>
    %c0_6 = arith.constant 0 : index
    %c0_7 = arith.constant 0 : index
    %c0_8 = arith.constant 0 : index
    %7 = vector.load %arg5[%c0_6, %c0_7, %c0_8] : memref<1x14x16xf32, #tpu.memory_space<vmem>>, vector<1x14x16xf32>
    %8 = vector.shape_cast %7 : vector<1x14x16xf32> to vector<14x16xf32>
    %9 = vector.shape_cast %6 : vector<14x16xf32> to vector<1x14x16xf32>
    tpu.vector_store %arg5[%c0_6, %c0_7, %c0_8], %9 {strides = array<i32>} : memref<1x14x16xf32, #tpu.memory_space<vmem>>, vector<1x14x16xf32>,
    return
  }
  func.func @transform_0(%arg0: i32, %arg1: i32) -> (i32, i32, i32) {
    %c0_i32 = arith.constant 0 : i32
    %c0_i32_0 = arith.constant 0 : i32
    return %arg0, %c0_i32, %arg1 : i32, i32, i32
  }
  func.func @transform_1(%arg0: i32, %arg1: i32) -> (i32, i32) {
    %c0_i32 = arith.constant 0 : i32
    %c0_i32_0 = arith.constant 0 : i32
    %c0_i32_1 = arith.constant 0 : i32
    return %c0_i32, %c0_i32_0 : i32, i32
  }
  func.func @transform_2(%arg0: i32, %arg1: i32) -> (i32, i32) {
    %c0_i32 = arith.constant 0 : i32
    %c0_i32_0 = arith.constant 0 : i32
    %c0_i32_1 = arith.constant 0 : i32
    return %c0_i32, %c0_i32_0 : i32, i32
  }
  func.func @transform_3(%arg0: i32, %arg1: i32) -> (i32, i32, i32) {
    %c0_i32 = arith.constant 0 : i32
    %c0_i32_0 = arith.constant 0 : i32
    return %arg0, %c0_i32, %arg1 : i32, i32, i32
  }
}

</mosaic_0001>

<llo_original>
// kernel: tpu_custom_call.1
$region0: #{tpu_custom_call.1}
  #allocation0 [shape = 'u32[]', space=smem, size = 0x4, offset = 0x4, fixed_abs, tag = 'smem constant byte address 0x4 - core index']
  #allocation1 [shape = 'u32[72,128]{1,0:T(1,128)}', space=vmem, size = 0x9000, scoped, tag = 'internal scratch']
  %s0 = inlined_call_operand.vmem [shape: f32[2,14,16], index: 0, kind: input, shape index: {}]
  %s1 = inlined_call_operand.vmem [shape: f32[14,14], index: 1, kind: input, shape index: {}]
  %s2 = inlined_call_operand.vmem [shape: f32[14,1], index: 2, kind: input, shape index: {}]
  %s3 = inlined_call_operand.vmem [shape: f32[2,14,16], index: 3, kind: output, shape index: {}]
  %s4 = sld [smem:[#allocation0]]
  $region45: #{tpu_custom_call.1} parent=0
    _
  %s6 = ssub.s32 1, %s4
  %s7 = scalar_select 0, %s6, %s4
  loop: start=0, step=1, limit=4
  $region2: #{tpu_custom_call.1} parent=0 // loop_pre_header
    _
  $region3: #{tpu_custom_call.1} parent=0 // loop_header
    %s9 = sphi 0, %s13
    %p10 = scmp.ge.s32.totalorder %s9, 4
    %s16 = sphi 0, %s28
    %s17 = sphi 0, %s24
    %s18 = sphi 0, %s16
    %s19 = sphi 0, %s17
    %s20 = sphi 0, %s18
    %s21 = sphi 0, %s19
    %s33 = sphi 0, %s35
    %s36 = sphi 0, %s33
    %s37 = sphi 0, %s36
    %s53 = sphi 0, %s37
    %s57 = sphi 0, %s57
    %s59 = sphi 0, %s57
    %s60 = sphi 0, %s59
    %s74 = sphi 0, %s60
    %s78 = sphi 0, %s78
    %s80 = sphi 0, %s78
    %s81 = sphi 0, %s80
    %s95 = sphi 0, %s81
    %s103 = sphi 0, %s105
    %s106 = sphi 0, %s103
    %s107 = sphi 0, %s106
    %s123 = sphi 0, %s107
  $region4: #{tpu_custom_call.1} parent=0 // loop_header_branch
    %12 = sbr.rel (%p10) target = $region8
  $region5: #{tpu_custom_call.1} parent=0 // loop_body
    %s14 = ssub.s32 %s9, 1
    %s15 = ssub.s32 %s9, 2
    %s22 = sadd.s32 1, %s17
    %p23 = scmp.ge.s32.totalorder %s22, 1
    %s24 = scalar_select %p23, 0, %s22
    %s25 = sadd.s32 1, %s16
    %s26 = scalar_select %p23, %s25, %s16
    %p27 = scmp.ge.s32.totalorder %s26, 2
    %s28 = scalar_select %p27, 0, %s26
    %s29 = ssub.s32 %s16, %s28
    %s30 = ssub.s32 %s17, %s24
    %s31 = sor.u32 %s29, %s30
    %p32 = scmp.eq.s32.totalorder %s31, 0
    %s34 = sadd.s32 %s33, 1
    %s35 = scalar_select %p32, %s33, %s34
    %p38 = pneg %p32
    %p39 = scmp.eq.s32.totalorder %s9, 1
    %p40 = por %p38, %p39
    %p41 = scmp.ne.s32.totalorder %s33, %s36
    %p42 = scmp.eq.s32.totalorder %s9, 0
    %p43 = por %p41, %p42
    %p44 = scmp.ne.s32.totalorder %s33, %s36
    %p45 = scmp.eq.s32.totalorder %s14, 1
    %p46 = por %p44, %p45
    %p47 = scmp.ne.s32.totalorder %s36, %s37
    %p48 = scmp.eq.s32.totalorder %s14, 0
    %p49 = por %p47, %p48
    %p50 = scmp.ne.s32.totalorder %s36, %s37
    %p51 = scmp.eq.s32.totalorder %s15, 1
    %p52 = por %p50, %p51
    %p54 = scmp.ne.s32.totalorder %s37, %s53
    %p55 = scmp.eq.s32.totalorder %s15, 0
    %p56 = por %p54, %p55
    %s58 = sadd.s32 %s57, 1
    %p61 = scmp.eq.s32.totalorder %s9, 1
    %p62 = scmp.ne.s32.totalorder %s57, %s59
    %p63 = scmp.eq.s32.totalorder %s9, 0
    %p64 = por %p62, %p63
    %p65 = scmp.ne.s32.totalorder %s57, %s59
    %p66 = scmp.eq.s32.totalorder %s14, 1
    %p67 = por %p65, %p66
    %p68 = scmp.ne.s32.totalorder %s59, %s60
    %p69 = scmp.eq.s32.totalorder %s14, 0
    %p70 = por %p68, %p69
    %p71 = scmp.ne.s32.totalorder %s59, %s60
    %p72 = scmp.eq.s32.totalorder %s15, 1
    %p73 = por %p71, %p72
    %p75 = scmp.ne.s32.totalorder %s60, %s74
    %p76 = scmp.eq.s32.totalorder %s15, 0
    %p77 = por %p75, %p76
    %s79 = sadd.s32 %s78, 1
    %p82 = scmp.eq.s32.totalorder %s9, 1
    %p83 = scmp.ne.s32.totalorder %s78, %s80
    %p84 = scmp.eq.s32.totalorder %s9, 0
    %p85 = por %p83, %p84
    %p86 = scmp.ne.s32.totalorder %s78, %s80
    %p87 = scmp.eq.s32.totalorder %s14, 1
    %p88 = por %p86, %p87
    %p89 = scmp.ne.s32.totalorder %s80, %s81
    %p90 = scmp.eq.s32.totalorder %s14, 0
    %p91 = por %p89, %p90
    %p92 = scmp.ne.s32.totalorder %s80, %s81
    %p93 = scmp.eq.s32.totalorder %s15, 1
    %p94 = por %p92, %p93
    %p96 = scmp.ne.s32.totalorder %s81, %s95
    %p97 = scmp.eq.s32.totalorder %s15, 0
    %p98 = por %p96, %p97
    %s99 = ssub.s32 %s16, %s28
    %s100 = ssub.s32 %s17, %s24
    %s101 = sor.u32 %s99, %s100
    %p102 = scmp.eq.s32.totalorder %s101, 0
    %s104 = sadd.s32 %s103, 1
    %s105 = scalar_select %p102, %s103, %s104
    %p108 = pneg %p102
    %p109 = scmp.eq.s32.totalorder %s9, 1
    %p110 = por %p108, %p109
    %p111 = scmp.ne.s32.totalorder %s103, %s106
    %p112 = scmp.eq.s32.totalorder %s9, 0
    %p113 = por %p111, %p112
    %p114 = scmp.ne.s32.totalorder %s103, %s106
    %p115 = scmp.eq.s32.totalorder %s14, 1
    %p116 = por %p114, %p115
    %p117 = scmp.ne.s32.totalorder %s106, %s107
    %p118 = scmp.eq.s32.totalorder %s14, 0
    %p119 = por %p117, %p118
    %p120 = scmp.ne.s32.totalorder %s106, %s107
    %p121 = scmp.eq.s32.totalorder %s15, 1
    %p122 = por %p120, %p121
    %p124 = scmp.ne.s32.totalorder %s107, %s123
    %p125 = scmp.eq.s32.totalorder %s15, 0
    %p126 = por %p124, %p125
    %p127 = scmp.le.s32.totalorder 1, %s9
    %p128 = scmp.lt.s32.totalorder %s9, 3
    %p129 = pnand %p127, %p128
    %p130 = pneg %p129
    // Predicated region
    $region9: #{tpu_custom_call.1} parent=5 // pred_check
      _
    $region10: #{tpu_custom_call.1} parent=5 // pred_check_branch
      %132 = sbr.rel (%p129) target = $region12
    $region11: #{tpu_custom_call.1} parent=5 // pred_region
      %s133 = ssub.s32 %s9, 1
      // Predicated region
      $region13: #{tpu_custom_call.1} parent=11 // pred_check
        %p134 = pneg %p70
      $region14: #{tpu_custom_call.1} parent=11 // pred_check_branch
        %136 = sbr.rel (%p134) target = $region16
      $region15: #{tpu_custom_call.1} parent=11 // pred_region
        _
      $region16: #{tpu_custom_call.1} parent=11 // pred_fallthru
        _
      // Predicated region
      $region17: #{tpu_custom_call.1} parent=11 // pred_check
        %p137 = pneg %p91
      $region18: #{tpu_custom_call.1} parent=11 // pred_check_branch
        %139 = sbr.rel (%p137) target = $region20
      $region19: #{tpu_custom_call.1} parent=11 // pred_region
        _
      $region20: #{tpu_custom_call.1} parent=11 // pred_fallthru
        _
    $region12: #{tpu_custom_call.1} parent=5 // pred_fallthru
      _
    %p140 = scmp.lt.s32.totalorder %s9, 2
    // Predicated region
    $region21: #{tpu_custom_call.1} parent=5 // pred_check
      %p141 = pneg %p140
    $region22: #{tpu_custom_call.1} parent=5 // pred_check_branch
      %143 = sbr.rel (%p141) target = $region24
    $region23: #{tpu_custom_call.1} parent=5 // pred_region
      // Predicated region
      $region25: #{tpu_custom_call.1} parent=23 // pred_check
        %p144 = pneg %p43
      $region26: #{tpu_custom_call.1} parent=23 // pred_check_branch
        %146 = sbr.rel (%p144) target = $region28
      $region27: #{tpu_custom_call.1} parent=23 // pred_region
        %p147 = scmp.lt.s32.totalorder %s16, 1
        %s148 = scalar_select %p147, %s16, 1
        %p149 = scmp.lt.s32.totalorder %s17, 0
        %s150 = scalar_select %p149, %s17, 0
        %s151 = smul.addr %s148, 2
        %s152 = sadd.s32 %s150, %s151
        %s153 = smul.addr %s152, 8
        %s154 = scalar_lea.vmem %s0, %s153
      $region28: #{tpu_custom_call.1} parent=23 // pred_fallthru
        _
    $region24: #{tpu_custom_call.1} parent=5 // pred_fallthru
      _
    %p155 = scmp.le.s32.totalorder 1, %s9
    %p156 = scmp.lt.s32.totalorder %s9, 3
    %p157 = pnand %p155, %p156
    %p158 = pneg %p157
    // Predicated region
    $region29: #{tpu_custom_call.1} parent=5 // pred_check
      _
    $region30: #{tpu_custom_call.1} parent=5 // pred_check_branch
      %160 = sbr.rel (%p157) target = $region32
    $region31: #{tpu_custom_call.1} parent=5 // pred_region
      %s161 = ssub.s32 %s9, 1
      %p162 = scmp.lt.s32.totalorder %s18, 1
      %s163 = scalar_select %p162, %s18, 1
      %p164 = scmp.lt.s32.totalorder %s19, 0
      %s165 = scalar_select %p164, %s19, 0
      %s166 = smul.addr %s163, 2
      %s167 = sadd.s32 %s165, %s166
      %s168 = smul.addr %s167, 8
      %s169 = scalar_lea.vmem %s0, %s168
      %p170 = pneg %p49
      %p171 = pneg %p46
      %p172 = pneg %p70
      %p173 = pneg %p67
      %p174 = pneg %p91
      %p175 = pneg %p88
      %p176 = pneg %p119
      %p177 = pneg %p116
      %p178 = scmp.lt.s32.totalorder %s18, 1
      %s179 = scalar_select %p178, %s18, 1
      %p180 = scmp.lt.s32.totalorder %s19, 0
      %s181 = scalar_select %p180, %s19, 0
      %s182 = smul.addr %s179, 2
      %s183 = sadd.s32 %s181, %s182
      %s184 = smul.addr %s183, 8
      %s185 = scalar_lea.vmem %s3, %s184
      %p186 = scmp.lt.s32.totalorder %s18, 1
      %s187 = scalar_select %p186, %s18, 1
      %p188 = scmp.lt.s32.totalorder %s19, 0
      %s189 = scalar_select %p188, %s19, 0
      %s190 = smul.addr %s187, 2
      %s191 = sadd.s32 %s189, %s190
      %s192 = smul.addr %s191, 8
      %s193 = scalar_lea.vmem %s0, %s192
      %p194 = scmp.lt.s32.totalorder %s18, 1
      %s195 = scalar_select %p194, %s18, 1
      %p196 = scmp.lt.s32.totalorder %s19, 0
      %s197 = scalar_select %p196, %s19, 0
      %s198 = smul.addr %s195, 2
      %s199 = sadd.s32 %s197, %s198
      %s200 = smul.addr %s199, 8
      %s201 = scalar_lea.vmem %s3, %s200
      %v202 = vld [vmem:[%s1] sm:$0xff]
      %v203 = vld [vmem:[%s1 + $0x8] sm:$0x3f]
      %v204 = vld [vmem:[%s2] sm:$0xff]
      %v205 = vld [vmem:[%s2 + $0x8] sm:$0x3f]
      %v206 = vld [vmem:[%s193] sm:$0xff]
      %v207 = vld [vmem:[%s193 + $0x8] sm:$0x3f]
      %209 = vset.pattern.permute.xlu0 0
      %210 = vperm.xlu0 %209, %v204
      %v211 = vpop.permute.xlu0 %210
      %214 = vset.pattern.permute.xlu0 0
      %215 = vperm.xlu0 %214, %v205
      %v216 = vpop.permute.xlu0 %215
      %vm218 = vcmask 113664
      %v220 = vsel %vm218, %v202, 0
      %v223 = vsel %vm218, %v203, 0
      %vm225 = vcmask 1045504
      %v227 = vsel %vm225, %v207, 0
      %229 = vmatpush.msra.mxu0 0.0
      %230 = vmatpush.msra.mxu0 0.0
      %231 = vmatpush.msra.mxu0 0.0
      %232 = vmatpush.msra.mxu0 0.0
      %233 = vmatpush.msra.mxu0 0.0
      %234 = vmatpush.msra.mxu0 0.0
      %235 = vmatpush.msra.mxu0 0.0
      %236 = vmatpush.msra.mxu0 0.0
      %237 = vmatpush.msra.mxu0 0.0
      %238 = vmatpush.msra.mxu0 0.0
      %239 = vmatpush.msra.mxu0 0.0
      %240 = vmatpush.msra.mxu0 0.0
      %241 = vmatpush.msra.mxu0 0.0
      %242 = vmatpush.msra.mxu0 0.0
      %243 = vmatpush.msra.mxu0 %v227
      %244 = vmatpush.msra.mxu0 %v206
      %245 = vmatmul.f32.gmra.mxu0 %v220
      %v246 = vpop.f32.mrf.mxu0
      %v247 = vadd.f32 %v211, %v246
      %248 = vmatmul.f32.gmra.mxu0 %v223
      %v249 = vpop.f32.mrf.mxu0
      %v250 = vadd.f32 %v216, %v249
      %251 = vdwg.mxu0
      %vm252 = vcmask 130048
      %253 = vst.msk [vmem:[%s201] sm:$0xff] %vm252, %v247
      %vm254 = vcmask 128000
      %255 = vst.msk [vmem:[%s201 + $0x8] sm:$0x3f] %vm254, %v250
      %p256 = scmp.lt.s32.totalorder %s18, 1
      %s257 = scalar_select %p256, %s18, 1
      %p258 = scmp.lt.s32.totalorder %s19, 0
      %s259 = scalar_select %p258, %s19, 0
      %s260 = smul.addr %s257, 2
      %s261 = sadd.s32 %s259, %s260
      %s262 = smul.addr %s261, 8
      %s263 = scalar_lea.vmem %s3, %s262
      // Predicated region
      $region33: #{tpu_custom_call.1} parent=31 // pred_check
        %p264 = pneg %p116
      $region34: #{tpu_custom_call.1} parent=31 // pred_check_branch
        %266 = sbr.rel (%p264) target = $region36
      $region35: #{tpu_custom_call.1} parent=31 // pred_region
        _
      $region36: #{tpu_custom_call.1} parent=31 // pred_fallthru
        _
    $region32: #{tpu_custom_call.1} parent=5 // pred_fallthru
      _
    %p267 = scmp.le.s32.totalorder 2, %s9
    // Predicated region
    $region37: #{tpu_custom_call.1} parent=5 // pred_check
      %p268 = pneg %p267
    $region38: #{tpu_custom_call.1} parent=5 // pred_check_branch
      %270 = sbr.rel (%p268) target = $region40
    $region39: #{tpu_custom_call.1} parent=5 // pred_region
      %s271 = ssub.s32 %s9, 2
      // Predicated region
      $region41: #{tpu_custom_call.1} parent=39 // pred_check
        %p272 = pneg %p122
      $region42: #{tpu_custom_call.1} parent=39 // pred_check_branch
        %274 = sbr.rel (%p272) target = $region44
      $region43: #{tpu_custom_call.1} parent=39 // pred_region
        %p275 = scmp.lt.s32.totalorder %s20, 1
        %s276 = scalar_select %p275, %s20, 1
        %p277 = scmp.lt.s32.totalorder %s21, 0
        %s278 = scalar_select %p277, %s21, 0
        %s279 = smul.addr %s276, 2
        %s280 = sadd.s32 %s278, %s279
        %s281 = smul.addr %s280, 8
        %s282 = scalar_lea.vmem %s3, %s281
      $region44: #{tpu_custom_call.1} parent=39 // pred_fallthru
        _
    $region40: #{tpu_custom_call.1} parent=5 // pred_fallthru
      _
  $region6: #{tpu_custom_call.1} parent=0 // loop_footer
    %s13 = sadd.s32 1, %s9
  $region7: #{tpu_custom_call.1} parent=0 // loop_footer_branch
    %8 = sbr.rel target = $region3
  $region8: #{tpu_custom_call.1} parent=0 // loop_exit
    _

</llo_original>
